<compile_context>
chip_gen: v6e
topology: v6e:2x2x1
jax: 0.10.0
libtpu: 0.0.40
codegen_flags: <defaults>
</compile_context>

<pallas_src>
import functools

import jax
import jax.numpy as jnp
from jax import lax
from jax.experimental import pallas as pl
from jax.experimental.pallas import tpu as pltpu

NEG_BIAS = -1e30  # bias for padded vocab columns -> exp() underflows to 0


def _round_up(x, m):
    return ((x + m - 1) // m) * m


def _cbow_kernel(x_smem, emb_ref, w1_ref, b1_ref, w2_ref, b2_ref, out_ref,
                 e_scratch, h_scratch, m_scratch, l_scratch, *, context_len):
    i = pl.program_id(0)   # batch tile
    p = pl.program_id(1)   # phase: 0 = accumulate softmax stats, 1 = write out
    j = pl.program_id(2)   # vocab tile

    tb = e_scratch.shape[0]
    ep = e_scratch.shape[1]

    # ---- once per batch tile: gather+sum embeddings, hidden layer, stat init
    @pl.when(jnp.logical_and(p == 0, j == 0))
    def _():
        def body_row(b, carry):
            row = jnp.zeros((1, ep), jnp.float32)
            for c in range(context_len):                      # small static loop
                tok = x_smem[(i * tb + b) * context_len + c]  # scalar from SMEM
                row = row + emb_ref[pl.ds(tok, 1), :]          # gather one row
            e_scratch[pl.ds(b, 1), :] = row
            return carry

        lax.fori_loop(0, tb, body_row, 0)

        h = jnp.dot(e_scratch[...].astype(jnp.bfloat16), w1_ref[...],
                    preferred_element_type=jnp.float32) + b1_ref[...]
        h_scratch[...] = jnp.maximum(h, 0.0)
        m_scratch[...] = jnp.full_like(m_scratch, -jnp.inf)
        l_scratch[...] = jnp.zeros_like(l_scratch)

    # ---- phase 0: online max / sum-of-exp over this vocab tile
    @pl.when(p == 0)
    def _():
        logits = jnp.dot(h_scratch[...].astype(jnp.bfloat16), w2_ref[...],
                         preferred_element_type=jnp.float32) + b2_ref[...]
        m_prev = m_scratch[...]
        m_new = jnp.maximum(m_prev, jnp.max(logits, axis=-1, keepdims=True))
        l_scratch[...] = (l_scratch[...] * jnp.exp(m_prev - m_new)
                          + jnp.sum(jnp.exp(logits - m_new), axis=-1,
                                    keepdims=True))
        m_scratch[...] = m_new

    # ---- phase 1: recompute this logits tile and emit log-probabilities
    @pl.when(p == 1)
    def _():
        logits = jnp.dot(h_scratch[...].astype(jnp.bfloat16), w2_ref[...],
                         preferred_element_type=jnp.float32) + b2_ref[...]
        out_ref[...] = logits - (m_scratch[...] + jnp.log(l_scratch[...]))


def cbow_forward(X, emb, w1, b1, w2, b2, *, batch_tile=128, vocab_tile=512):
    """log_softmax(relu(sum_c emb[X[:, c]] @ W1 + b1) @ W2 + b2)."""
    B, C = X.shape
    V, E = emb.shape
    H = w1.shape[1]

    # ---- pad to MXU / lane-friendly shapes --------------------------------
    TB = min(batch_tile, _round_up(B, 8))
    Bp = _round_up(B, TB)
    TV = min(vocab_tile, _round_up(V, 128))
    Vp = _round_up(V, TV)
    Ep = _round_up(E, 128)
    Hp = _round_up(H, 128)

    x_pad = jnp.zeros((Bp, C), jnp.int32).at[:B].set(X.astype(jnp.int32))
    x_flat = x_pad.reshape(-1)                     # 1-D -> cheap SMEM layout

    emb_p = jnp.zeros((Vp, Ep), jnp.float32).at[:V, :E].set(
        emb.astype(jnp.float32))
    w1_p = jnp.zeros((Ep, Hp), jnp.bfloat16).at[:E, :H].set(
        w1.astype(jnp.bfloat16))
    b1_p = jnp.zeros((1, Hp), jnp.float32).at[0, :H].set(
        b1.reshape(-1).astype(jnp.float32))
    w2_p = jnp.zeros((Hp, Vp), jnp.bfloat16).at[:H, :V].set(
        w2.astype(jnp.bfloat16))
    b2_p = jnp.full((1, Vp), NEG_BIAS, jnp.float32).at[0, :V].set(
        b2.reshape(-1).astype(jnp.float32))

    n_b = Bp // TB
    n_v = Vp // TV

    kernel = functools.partial(_cbow_kernel, context_len=C)

    grid_spec = pltpu.PrefetchScalarGridSpec(
        num_scalar_prefetch=1,                     # X -> SMEM
        grid=(n_b, 2, n_v),
        in_specs=[
            pl.BlockSpec((Vp, Ep), lambda i, p, j, xs: (0, 0)),   # embedding
            pl.BlockSpec((Ep, Hp), lambda i, p, j, xs: (0, 0)),   # W1
            pl.BlockSpec((1, Hp),  lambda i, p, j, xs: (0, 0)),   # b1
            pl.BlockSpec((Hp, TV), lambda i, p, j, xs: (0, j)),   # W2 (tiled)
            pl.BlockSpec((1, TV),  lambda i, p, j, xs: (0, j)),   # b2 (tiled)
        ],
        # phase-0 steps all map to block (i, 0); only phase 1 writes outputs,
        # so every output block is written exactly once, lane-dense.
        out_specs=pl.BlockSpec((TB, TV), lambda i, p, j, xs: (i, j * p)),
        scratch_shapes=[
            pltpu.VMEM((TB, Ep), jnp.float32),   # summed embeddings
            pltpu.VMEM((TB, Hp), jnp.float32),   # hidden activations (ReLU)
            pltpu.VMEM((TB, 1), jnp.float32),    # running max
            pltpu.VMEM((TB, 1), jnp.float32),    # running sum of exp
        ],
    )

    out = pl.pallas_call(
        kernel,
        out_shape=jax.ShapeDtypeStruct((Bp, Vp), jnp.float32),
        grid_spec=grid_spec,
        compiler_params=pltpu.CompilerParams(
            dimension_semantics=("parallel", "arbitrary", "arbitrary"),
            vmem_limit_bytes=48 * 1024 * 1024,
        ),
    )(x_flat, emb_p, w1_p, b1_p, w2_p, b2_p)

    return out[:B, :V]


if __name__ == "__main__":
    vocab_size = 32
    embedd_dim = 16
    hidden_dim = 128          # module default
    batch = 4
    context_len = 8

    key = jax.random.PRNGKey(0)
    k_x, k_e, k_w1, k_b1, k_w2, k_b2 = jax.random.split(key, 6)

    X = jax.random.randint(k_x, (batch, context_len), 0, vocab_size,
                           dtype=jnp.int32)
    emb = jax.random.normal(k_e, (vocab_size, embedd_dim), dtype=jnp.float32)
    w1 = jax.random.normal(k_w1, (embedd_dim, hidden_dim), dtype=jnp.float32) * 0.1
    b1 = jax.random.normal(k_b1, (hidden_dim,), dtype=jnp.float32) * 0.1
    w2 = jax.random.normal(k_w2, (hidden_dim, vocab_size), dtype=jnp.float32) * 0.1
    b2 = jax.random.normal(k_b2, (vocab_size,), dtype=jnp.float32) * 0.1

    out = cbow_forward(X, emb, w1, b1, w2, b2)
    out = jax.block_until_ready(out)

    # Pure-JAX fp32 reference of the same forward semantics.
    ref_embedd = jnp.sum(emb[X], axis=1)
    ref_h = jnp.maximum(ref_embedd @ w1 + b1, 0.0)
    ref_logits = ref_h @ w2 + b2
    ref = jax.nn.log_softmax(ref_logits, axis=-1)

    assert out.shape == (batch, vocab_size)
    err = float(jnp.max(jnp.abs(out - ref)))
    assert err < 3e-2, f"mismatch vs reference: max abs err {err}"
    print("KERNEL_OK")
</pallas_src>

<mosaic_0001>
module attributes {stable_mosaic.version = 11 : i64} {
  func.func @_cbow_kernel(%arg0: i32, %arg1: i32, %arg2: i32, %arg3: memref<64xi32, #tpu.memory_space<smem>>, %arg4: memref<128x128xf32, #tpu.memory_space<vmem>>, %arg5: memref<128x128xbf16, #tpu.memory_space<vmem>>, %arg6: memref<1x128xf32, #tpu.memory_space<vmem>>, %arg7: memref<128x128xbf16, #tpu.memory_space<vmem>>, %arg8: memref<1x128xf32, #tpu.memory_space<vmem>>, %arg9: memref<8x128xf32, #tpu.memory_space<vmem>>, %arg10: memref<8x128xf32, #tpu.memory_space<vmem>>, %arg11: memref<8x128xf32, #tpu.memory_space<vmem>>, %arg12: memref<8x1xf32, #tpu.memory_space<vmem>>, %arg13: memref<8x1xf32, #tpu.memory_space<vmem>>) attributes {dimension_semantics = [#tpu.dimension_semantics<parallel>, #tpu.dimension_semantics<arbitrary>, #tpu.dimension_semantics<arbitrary>], iteration_bounds = array<i64: 1, 2, 1>, scalar_prefetch = 1 : i64, scratch_operands = 4 : i64, tpu.core_type = #tpu.core_type<tc>, window_params = [{pipeline_mode = #tpu.pipeline_mode<synchronous>, transform_indices = @transform_0, window_bounds = array<i64: 128, 128>}, {pipeline_mode = #tpu.pipeline_mode<synchronous>, transform_indices = @transform_1, window_bounds = array<i64: 128, 128>}, {pipeline_mode = #tpu.pipeline_mode<synchronous>, transform_indices = @transform_2, window_bounds = array<i64: 1, 128>}, {transform_indices = @transform_3, window_bounds = array<i64: 128, 128>}, {transform_indices = @transform_4, window_bounds = array<i64: 1, 128>}, {transform_indices = @transform_5, window_bounds = array<i64: 8, 128>}]} {
    %c0_i32 = arith.constant 0 : i32
    %0 = arith.cmpi eq, %arg1, %c0_i32 : i32
    %c0_i32_0 = arith.constant 0 : i32
    %1 = arith.cmpi eq, %arg2, %c0_i32_0 : i32
    %2 = arith.andi %0, %1 : i1
    %3 = arith.extui %2 : i1 to i32
    %c0_i32_1 = arith.constant 0 : i32
    %4 = arith.cmpi ne, %3, %c0_i32_1 : i32
    scf.if %4 {
      %c0_i32_5 = arith.constant 0 : i32
      %c8_i32 = arith.constant 8 : i32
      %11 = arith.addi %c0_i32_5, %c8_i32 : i32
      %c1_i32_6 = arith.constant 1 : i32
      scf.for %arg14 = %c0_i32_5 to %11 step %c1_i32_6  : i32 {
        %cst_22 = arith.constant 0.000000e+00 : f32
        %26 = vector.broadcast %cst_22 : f32 to vector<1x128xf32>
        %c8_i32_23 = arith.constant 8 : i32
        %27 = arith.muli %arg0, %c8_i32_23 : i32
        %28 = arith.addi %27, %arg14 : i32
        %c8_i32_24 = arith.constant 8 : i32
        %29 = arith.muli %28, %c8_i32_24 : i32
        %c0_i32_25 = arith.constant 0 : i32
        %30 = arith.addi %29, %c0_i32_25 : i32
        %31 = arith.index_cast %30 : i32 to index
        %32 = memref.load %arg3[%31] : memref<64xi32, #tpu.memory_space<smem>>
        %33 = arith.index_cast %32 : i32 to index
        %c0_26 = arith.constant 0 : index
        %34 = vector.load %arg4[%33, %c0_26] : memref<128x128xf32, #tpu.memory_space<vmem>>, vector<1x128xf32>
        %35 = arith.addf %26, %34 : vector<1x128xf32>
        %c8_i32_27 = arith.constant 8 : i32
        %36 = arith.muli %arg0, %c8_i32_27 : i32
        %37 = arith.addi %36, %arg14 : i32
        %c8_i32_28 = arith.constant 8 : i32
        %38 = arith.muli %37, %c8_i32_28 : i32
        %c1_i32_29 = arith.constant 1 : i32
        %39 = arith.addi %38, %c1_i32_29 : i32
        %40 = arith.index_cast %39 : i32 to index
        %41 = memref.load %arg3[%40] : memref<64xi32, #tpu.memory_space<smem>>
        %42 = arith.index_cast %41 : i32 to index
        %c0_30 = arith.constant 0 : index
        %43 = vector.load %arg4[%42, %c0_30] : memref<128x128xf32, #tpu.memory_space<vmem>>, vector<1x128xf32>
        %44 = arith.addf %35, %43 : vector<1x128xf32>
        %c8_i32_31 = arith.constant 8 : i32
        %45 = arith.muli %arg0, %c8_i32_31 : i32
        %46 = arith.addi %45, %arg14 : i32
        %c8_i32_32 = arith.constant 8 : i32
        %47 = arith.muli %46, %c8_i32_32 : i32
        %c2_i32 = arith.constant 2 : i32
        %48 = arith.addi %47, %c2_i32 : i32
        %49 = arith.index_cast %48 : i32 to index
        %50 = memref.load %arg3[%49] : memref<64xi32, #tpu.memory_space<smem>>
        %51 = arith.index_cast %50 : i32 to index
        %c0_33 = arith.constant 0 : index
        %52 = vector.load %arg4[%51, %c0_33] : memref<128x128xf32, #tpu.memory_space<vmem>>, vector<1x128xf32>
        %53 = arith.addf %44, %52 : vector<1x128xf32>
        %c8_i32_34 = arith.constant 8 : i32
        %54 = arith.muli %arg0, %c8_i32_34 : i32
        %55 = arith.addi %54, %arg14 : i32
        %c8_i32_35 = arith.constant 8 : i32
        %56 = arith.muli %55, %c8_i32_35 : i32
        %c3_i32 = arith.constant 3 : i32
        %57 = arith.addi %56, %c3_i32 : i32
        %58 = arith.index_cast %57 : i32 to index
        %59 = memref.load %arg3[%58] : memref<64xi32, #tpu.memory_space<smem>>
        %60 = arith.index_cast %59 : i32 to index
        %c0_36 = arith.constant 0 : index
        %61 = vector.load %arg4[%60, %c0_36] : memref<128x128xf32, #tpu.memory_space<vmem>>, vector<1x128xf32>
        %62 = arith.addf %53, %61 : vector<1x128xf32>
        %c8_i32_37 = arith.constant 8 : i32
        %63 = arith.muli %arg0, %c8_i32_37 : i32
        %64 = arith.addi %63, %arg14 : i32
        %c8_i32_38 = arith.constant 8 : i32
        %65 = arith.muli %64, %c8_i32_38 : i32
        %c4_i32 = arith.constant 4 : i32
        %66 = arith.addi %65, %c4_i32 : i32
        %67 = arith.index_cast %66 : i32 to index
        %68 = memref.load %arg3[%67] : memref<64xi32, #tpu.memory_space<smem>>
        %69 = arith.index_cast %68 : i32 to index
        %c0_39 = arith.constant 0 : index
        %70 = vector.load %arg4[%69, %c0_39] : memref<128x128xf32, #tpu.memory_space<vmem>>, vector<1x128xf32>
        %71 = arith.addf %62, %70 : vector<1x128xf32>
        %c8_i32_40 = arith.constant 8 : i32
        %72 = arith.muli %arg0, %c8_i32_40 : i32
        %73 = arith.addi %72, %arg14 : i32
        %c8_i32_41 = arith.constant 8 : i32
        %74 = arith.muli %73, %c8_i32_41 : i32
        %c5_i32 = arith.constant 5 : i32
        %75 = arith.addi %74, %c5_i32 : i32
        %76 = arith.index_cast %75 : i32 to index
        %77 = memref.load %arg3[%76] : memref<64xi32, #tpu.memory_space<smem>>
        %78 = arith.index_cast %77 : i32 to index
        %c0_42 = arith.constant 0 : index
        %79 = vector.load %arg4[%78, %c0_42] : memref<128x128xf32, #tpu.memory_space<vmem>>, vector<1x128xf32>
        %80 = arith.addf %71, %79 : vector<1x128xf32>
        %c8_i32_43 = arith.constant 8 : i32
        %81 = arith.muli %arg0, %c8_i32_43 : i32
        %82 = arith.addi %81, %arg14 : i32
        %c8_i32_44 = arith.constant 8 : i32
        %83 = arith.muli %82, %c8_i32_44 : i32
        %c6_i32 = arith.constant 6 : i32
        %84 = arith.addi %83, %c6_i32 : i32
        %85 = arith.index_cast %84 : i32 to index
        %86 = memref.load %arg3[%85] : memref<64xi32, #tpu.memory_space<smem>>
        %87 = arith.index_cast %86 : i32 to index
        %c0_45 = arith.constant 0 : index
        %88 = vector.load %arg4[%87, %c0_45] : memref<128x128xf32, #tpu.memory_space<vmem>>, vector<1x128xf32>
        %89 = arith.addf %80, %88 : vector<1x128xf32>
        %c8_i32_46 = arith.constant 8 : i32
        %90 = arith.muli %arg0, %c8_i32_46 : i32
        %91 = arith.addi %90, %arg14 : i32
        %c8_i32_47 = arith.constant 8 : i32
        %92 = arith.muli %91, %c8_i32_47 : i32
        %c7_i32 = arith.constant 7 : i32
        %93 = arith.addi %92, %c7_i32 : i32
        %94 = arith.index_cast %93 : i32 to index
        %95 = memref.load %arg3[%94] : memref<64xi32, #tpu.memory_space<smem>>
        %96 = arith.index_cast %95 : i32 to index
        %c0_48 = arith.constant 0 : index
        %97 = vector.load %arg4[%96, %c0_48] : memref<128x128xf32, #tpu.memory_space<vmem>>, vector<1x128xf32>
        %98 = arith.addf %89, %97 : vector<1x128xf32>
        %99 = arith.index_cast %arg14 : i32 to index
        %c0_49 = arith.constant 0 : index
        %100 = vector.load %arg10[%99, %c0_49] : memref<8x128xf32, #tpu.memory_space<vmem>>, vector<1x128xf32>
        tpu.vector_store %arg10[%99, %c0_49], %98 {strides = array<i32>} : memref<8x128xf32, #tpu.memory_space<vmem>>, vector<1x128xf32>,
      }
      %c8_i32_7 = arith.constant 8 : i32
      %c0 = arith.constant 0 : index
      %c0_8 = arith.constant 0 : index
      %12 = vector.load %arg10[%c0, %c0_8] : memref<8x128xf32, #tpu.memory_space<vmem>>, vector<8x128xf32>
      %13 = arith.truncf %12 : vector<8x128xf32> to vector<8x128xbf16>
      %c0_9 = arith.constant 0 : index
      %c0_10 = arith.constant 0 : index
      %14 = vector.load %arg5[%c0_9, %c0_10] : memref<128x128xbf16, #tpu.memory_space<vmem>>, vector<128x128xbf16>
      %cst = arith.constant dense<0.000000e+00> : vector<8x128xf32>
      %15 = tpu.matmul %13, %14, %cst {dimension_numbers = #tpu.dot_dimension_numbers<[1], [0], [0], [1], [0, 0, 1, 1], [], []>} : vector<8x128xbf16>, vector<128x128xbf16>, vector<8x128xf32> -> vector<8x128xf32>
      %c0_11 = arith.constant 0 : index
      %c0_12 = arith.constant 0 : index
      %16 = vector.load %arg6[%c0_11, %c0_12] : memref<1x128xf32, #tpu.memory_space<vmem>>, vector<1x128xf32>
      %17 = vector.broadcast %16 : vector<1x128xf32> to vector<8x128xf32>
      %18 = arith.addf %15, %17 : vector<8x128xf32>
      %cst_13 = arith.constant 0.000000e+00 : f32
      %19 = vector.broadcast %cst_13 : f32 to vector<8x128xf32>
      %20 = arith.maximumf %18, %19 : vector<8x128xf32>
      %c0_14 = arith.constant 0 : index
      %c0_15 = arith.constant 0 : index
      %21 = vector.load %arg11[%c0_14, %c0_15] : memref<8x128xf32, #tpu.memory_space<vmem>>, vector<8x128xf32>
      tpu.vector_store %arg11[%c0_14, %c0_15], %20 {strides = array<i32>} : memref<8x128xf32, #tpu.memory_space<vmem>>, vector<8x128xf32>,
      %cst_16 = arith.constant 0xFF800000 : f32
      %22 = vector.broadcast %cst_16 : f32 to vector<8x1xf32>
      %c0_17 = arith.constant 0 : index
      %c0_18 = arith.constant 0 : index
      %23 = vector.load %arg12[%c0_17, %c0_18] : memref<8x1xf32, #tpu.memory_space<vmem>>, vector<8x1xf32>
      tpu.vector_store %arg12[%c0_17, %c0_18], %22 {strides = array<i32>} : memref<8x1xf32, #tpu.memory_space<vmem>>, vector<8x1xf32>,
      %cst_19 = arith.constant 0.000000e+00 : f32
      %24 = vector.broadcast %cst_19 : f32 to vector<8x1xf32>
      %c0_20 = arith.constant 0 : index
      %c0_21 = arith.constant 0 : index
      %25 = vector.load %arg13[%c0_20, %c0_21] : memref<8x1xf32, #tpu.memory_space<vmem>>, vector<8x1xf32>
      tpu.vector_store %arg13[%c0_20, %c0_21], %24 {strides = array<i32>} : memref<8x1xf32, #tpu.memory_space<vmem>>, vector<8x1xf32>,
    } else {
    }
    %c0_i32_2 = arith.constant 0 : i32
    %5 = arith.cmpi eq, %arg1, %c0_i32_2 : i32
    %6 = arith.extui %5 : i1 to i32
    %c0_i32_3 = arith.constant 0 : i32
    %7 = arith.cmpi ne, %6, %c0_i32_3 : i32
    scf.if %7 {
      %c0 = arith.constant 0 : index
      %c0_5 = arith.constant 0 : index
      %11 = vector.load %arg11[%c0, %c0_5] : memref<8x128xf32, #tpu.memory_space<vmem>>, vector<8x128xf32>
      %12 = arith.truncf %11 : vector<8x128xf32> to vector<8x128xbf16>
      %c0_6 = arith.constant 0 : index
      %c0_7 = arith.constant 0 : index
      %13 = vector.load %arg7[%c0_6, %c0_7] : memref<128x128xbf16, #tpu.memory_space<vmem>>, vector<128x128xbf16>
      %cst = arith.constant dense<0.000000e+00> : vector<8x128xf32>
      %14 = tpu.matmul %12, %13, %cst {dimension_numbers = #tpu.dot_dimension_numbers<[1], [0], [0], [1], [0, 0, 1, 1], [], []>} : vector<8x128xbf16>, vector<128x128xbf16>, vector<8x128xf32> -> vector<8x128xf32>
      %c0_8 = arith.constant 0 : index
      %c0_9 = arith.constant 0 : index
      %15 = vector.load %arg8[%c0_8, %c0_9] : memref<1x128xf32, #tpu.memory_space<vmem>>, vector<1x128xf32>
      %16 = vector.broadcast %15 : vector<1x128xf32> to vector<8x128xf32>
      %17 = arith.addf %14, %16 : vector<8x128xf32>
      %c0_10 = arith.constant 0 : index
      %c0_11 = arith.constant 0 : index
      %18 = vector.load %arg12[%c0_10, %c0_11] : memref<8x1xf32, #tpu.memory_space<vmem>>, vector<8x1xf32>
      %cst_12 = arith.constant dense<0xFF800000> : vector<8xf32>
      %19 = vector.multi_reduction <maximumf>, %17, %cst_12 [1] : vector<8x128xf32> to vector<8xf32>
      %20 = vector.shape_cast %19 : vector<8xf32> to vector<8x1xf32>
      %21 = arith.maximumf %18, %20 : vector<8x1xf32>
      %c0_13 = arith.constant 0 : index
      %c0_14 = arith.constant 0 : index
      %22 = vector.load %arg13[%c0_13, %c0_14] : memref<8x1xf32, #tpu.memory_space<vmem>>, vector<8x1xf32>
      %23 = arith.subf %18, %21 : vector<8x1xf32>
      %24 = math.exp %23 : vector<8x1xf32>
      %25 = arith.mulf %22, %24 : vector<8x1xf32>
      %26 = vector.broadcast %21 : vector<8x1xf32> to vector<8x128xf32>
      %27 = arith.subf %17, %26 : vector<8x128xf32>
      %28 = math.exp %27 : vector<8x128xf32>
      %cst_15 = arith.constant dense<0.000000e+00> : vector<8xf32>
      %29 = vector.multi_reduction <add>, %28, %cst_15 [1] : vector<8x128xf32> to vector<8xf32>
      %30 = vector.shape_cast %29 : vector<8xf32> to vector<8x1xf32>
      %31 = arith.addf %25, %30 : vector<8x1xf32>
      %c0_16 = arith.constant 0 : index
      %c0_17 = arith.constant 0 : index
      %32 = vector.load %arg13[%c0_16, %c0_17] : memref<8x1xf32, #tpu.memory_space<vmem>>, vector<8x1xf32>
      tpu.vector_store %arg13[%c0_16, %c0_17], %31 {strides = array<i32>} : memref<8x1xf32, #tpu.memory_space<vmem>>, vector<8x1xf32>,
      %c0_18 = arith.constant 0 : index
      %c0_19 = arith.constant 0 : index
      %33 = vector.load %arg12[%c0_18, %c0_19] : memref<8x1xf32, #tpu.memory_space<vmem>>, vector<8x1xf32>
      tpu.vector_store %arg12[%c0_18, %c0_19], %21 {strides = array<i32>} : memref<8x1xf32, #tpu.memory_space<vmem>>, vector<8x1xf32>,
    } else {
    }
    %c1_i32 = arith.constant 1 : i32
    %8 = arith.cmpi eq, %arg1, %c1_i32 : i32
    %9 = arith.extui %8 : i1 to i32
    %c0_i32_4 = arith.constant 0 : i32
    %10 = arith.cmpi ne, %9, %c0_i32_4 : i32
    scf.if %10 {
      %c0 = arith.constant 0 : index
      %c0_5 = arith.constant 0 : index
      %11 = vector.load %arg11[%c0, %c0_5] : memref<8x128xf32, #tpu.memory_space<vmem>>, vector<8x128xf32>
      %12 = arith.truncf %11 : vector<8x128xf32> to vector<8x128xbf16>
      %c0_6 = arith.constant 0 : index
      %c0_7 = arith.constant 0 : index
      %13 = vector.load %arg7[%c0_6, %c0_7] : memref<128x128xbf16, #tpu.memory_space<vmem>>, vector<128x128xbf16>
      %cst = arith.constant dense<0.000000e+00> : vector<8x128xf32>
      %14 = tpu.matmul %12, %13, %cst {dimension_numbers = #tpu.dot_dimension_numbers<[1], [0], [0], [1], [0, 0, 1, 1], [], []>} : vector<8x128xbf16>, vector<128x128xbf16>, vector<8x128xf32> -> vector<8x128xf32>
      %c0_8 = arith.constant 0 : index
      %c0_9 = arith.constant 0 : index
      %15 = vector.load %arg8[%c0_8, %c0_9] : memref<1x128xf32, #tpu.memory_space<vmem>>, vector<1x128xf32>
      %16 = vector.broadcast %15 : vector<1x128xf32> to vector<8x128xf32>
      %17 = arith.addf %14, %16 : vector<8x128xf32>
      %c0_10 = arith.constant 0 : index
      %c0_11 = arith.constant 0 : index
      %18 = vector.load %arg12[%c0_10, %c0_11] : memref<8x1xf32, #tpu.memory_space<vmem>>, vector<8x1xf32>
      %c0_12 = arith.constant 0 : index
      %c0_13 = arith.constant 0 : index
      %19 = vector.load %arg13[%c0_12, %c0_13] : memref<8x1xf32, #tpu.memory_space<vmem>>, vector<8x1xf32>
      %20 = math.log %19 : vector<8x1xf32>
      %21 = arith.addf %18, %20 : vector<8x1xf32>
      %22 = vector.broadcast %21 : vector<8x1xf32> to vector<8x128xf32>
      %23 = arith.subf %17, %22 : vector<8x128xf32>
      %c0_14 = arith.constant 0 : index
      %c0_15 = arith.constant 0 : index
      %24 = vector.load %arg9[%c0_14, %c0_15] : memref<8x128xf32, #tpu.memory_space<vmem>>, vector<8x128xf32>
      tpu.vector_store %arg9[%c0_14, %c0_15], %23 {strides = array<i32>} : memref<8x128xf32, #tpu.memory_space<vmem>>, vector<8x128xf32>,
    } else {
    }
    return
  }
  func.func @transform_0(%arg0: i32, %arg1: i32, %arg2: i32, %arg3: memref<64xi32, #tpu.memory_space<smem>>) -> (i32, i32) {
    %c0_i32 = arith.constant 0 : i32
    %c0_i32_0 = arith.constant 0 : i32
    %c0_i32_1 = arith.constant 0 : i32
    return %c0_i32, %c0_i32_0 : i32, i32
  }
  func.func @transform_1(%arg0: i32, %arg1: i32, %arg2: i32, %arg3: memref<64xi32, #tpu.memory_space<smem>>) -> (i32, i32) {
    %c0_i32 = arith.constant 0 : i32
    %c0_i32_0 = arith.constant 0 : i32
    %c0_i32_1 = arith.constant 0 : i32
    return %c0_i32, %c0_i32_0 : i32, i32
  }
  func.func @transform_2(%arg0: i32, %arg1: i32, %arg2: i32, %arg3: memref<64xi32, #tpu.memory_space<smem>>) -> (i32, i32) {
    %c0_i32 = arith.constant 0 : i32
    %c0_i32_0 = arith.constant 0 : i32
    %c0_i32_1 = arith.constant 0 : i32
    return %c0_i32, %c0_i32_0 : i32, i32
  }
  func.func @transform_3(%arg0: i32, %arg1: i32, %arg2: i32, %arg3: memref<64xi32, #tpu.memory_space<smem>>) -> (i32, i32) {
    %c0_i32 = arith.constant 0 : i32
    %c0_i32_0 = arith.constant 0 : i32
    return %c0_i32, %arg2 : i32, i32
  }
  func.func @transform_4(%arg0: i32, %arg1: i32, %arg2: i32, %arg3: memref<64xi32, #tpu.memory_space<smem>>) -> (i32, i32) {
    %c0_i32 = arith.constant 0 : i32
    %c0_i32_0 = arith.constant 0 : i32
    return %c0_i32, %arg2 : i32, i32
  }
  func.func @transform_5(%arg0: i32, %arg1: i32, %arg2: i32, %arg3: memref<64xi32, #tpu.memory_space<smem>>) -> (i32, i32) {
    %0 = arith.muli %arg2, %arg1 : i32
    %c0_i32 = arith.constant 0 : i32
    return %arg0, %0 : i32, i32
  }
}

</mosaic_0001>

<llo_original>
// kernel: tpu_custom_call.1
$region0: #{tpu_custom_call.1}
  #allocation0 [shape = 'u32[]', space=smem, size = 0x4, offset = 0x4, fixed_abs, tag = 'smem constant byte address 0x4 - core index']
  #allocation1 [shape = 'u32[144,128]{1,0:T(1,128)}', space=vmem, size = 0x12000, scoped, tag = 'internal scratch']
  #allocation2 [shape = 'f32[8,128]{1,0:T(8,128)}', space=vmem, size = 0x1000, scoped, tag = 'scratch operand']
  #allocation3 [shape = 'f32[8,128]{1,0:T(8,128)}', space=vmem, size = 0x1000, scoped, tag = 'scratch operand']
  #allocation4 [shape = 'f32[8,1]{1,0:T(8,128)}', space=vmem, size = 0x1000, scoped, tag = 'scratch operand']
  #allocation5 [shape = 'f32[8,1]{1,0:T(8,128)}', space=vmem, size = 0x1000, scoped, tag = 'scratch operand']
  #allocation6 [shape = 's32[1]{0}', space=sflag, size = 0x4, scoped, tag = 'scoped memory for tpu_custom_call.1']
  #allocation7 [shape = 'u8[512]{0}', space=smem, size = 0x200, scoped, tag = 'prefetched SMEM operand 0']
  %s0 = inlined_call_operand.hbm [shape: s32[64], index: 0, kind: input, shape index: {}]
  %s1 = inlined_call_operand.hbm [shape: f32[128,128], index: 1, kind: input, shape index: {}]
  %s2 = inlined_call_operand.hbm [shape: bf16[128,128], index: 2, kind: input, shape index: {}]
  %s3 = inlined_call_operand.vmem [shape: f32[1,128], index: 3, kind: input, shape index: {}]
  %s4 = inlined_call_operand.hbm [shape: bf16[128,128], index: 4, kind: input, shape index: {}]
  %s5 = inlined_call_operand.vmem [shape: f32[1,128], index: 5, kind: input, shape index: {}]
  %s6 = inlined_call_operand.hbm [shape: f32[8,128], index: 6, kind: output, shape index: {}]
  %s7 = sld [smem:[#allocation0]]
  $region84: #{tpu_custom_call.1} parent=0
    _
  %s9 = ssub.s32 1, %s7
  %s10 = scalar_select 0, %s9, %s7
  %12 = dma.hbm_to_smem %s0, 16, [#allocation7], [#allocation6]
  %13 = dma.done [#allocation6], 16
  %14 = sfence
  $region1: #{tpu_custom_call.1} parent=0
    #allocation8 [shape = 'u8[65536]{0}', space=vmem, size = 0x10000, scoped, tag = 'input window, operand 1, single buffered']
    #allocation9 [shape = 's32[2]{0}', space=sflag, size = 0x8, scoped, tag = 'scoped memory for tpu_custom_call.1']
    #allocation10 [shape = 's32[2]{0}', space=sflag, size = 0x8, scoped, tag = 'scoped memory for tpu_custom_call.1']
    #allocation11 [shape = 'u8[32768]{0}', space=vmem, size = 0x8000, scoped, tag = 'input window, operand 2, single buffered']
    #allocation12 [shape = 's32[1]{0}', space=sflag, size = 0x4, scoped, tag = 'scoped memory for tpu_custom_call.1']
    #allocation13 [shape = 'u8[32768]{0}', space=vmem, size = 0x8000, scoped, tag = 'input window, operand 4, single buffered']
    #allocation14 [shape = 'u8[8192]{0}', space=vmem, size = 0x2000, scoped, tag = 'output window, operand 0']
    %15 = vsyncpa [#allocation9], 0
    %16 = vsyncpa [#allocation12], 0
    %17 = vsyncpa [#allocation10], 0
    %s18 = scalar_lea.sflag [#allocation10], 1
    %19 = vsyncpa %s18, 0
    loop: start=0, step=1, limit=4
    $region2: #{tpu_custom_call.1} parent=1 // loop_pre_header
      _
    $region3: #{tpu_custom_call.1} parent=1 // loop_header
      %s21 = sphi 0, %s25
      %p22 = scmp.ge.s32.totalorder %s21, 4
      %s28 = sphi 0, %s47
      %s29 = sphi 0, %s43
      %s30 = sphi 0, %s39
      %s31 = sphi 0, %s28
      %s32 = sphi 0, %s29
      %s33 = sphi 0, %s30
      %s34 = sphi 0, %s31
      %s35 = sphi 0, %s32
      %s36 = sphi 0, %s33
      %s48 = sphi 0, %s48
      %s50 = sphi 0, %s48
      %s51 = sphi 0, %s50
      %s65 = sphi 0, %s51
      %s69 = sphi 0, %s69
      %s71 = sphi 0, %s69
      %s72 = sphi 0, %s71
      %s86 = sphi 0, %s72
      %s90 = sphi 0, %s90
      %s92 = sphi 0, %s90
      %s93 = sphi 0, %s92
      %s107 = sphi 0, %s93
      %s113 = sphi 0, %s115
      %s116 = sphi 0, %s113
      %s117 = sphi 0, %s116
      %s133 = sphi 0, %s117
      %s139 = sphi 0, %s141
      %s142 = sphi 0, %s139
      %s143 = sphi 0, %s142
      %s159 = sphi 0, %s143
      %s169 = sphi 0, %s171
      %s172 = sphi 0, %s169
      %s173 = sphi 0, %s172
      %s189 = sphi 0, %s173
    $region4: #{tpu_custom_call.1} parent=1 // loop_header_branch
      %24 = sbr.rel (%p22) target = $region8
    $region5: #{tpu_custom_call.1} parent=1 // loop_body
      %s26 = ssub.s32 %s21, 1
      %s27 = ssub.s32 %s21, 2
      %s37 = sadd.s32 1, %s30
      %p38 = scmp.ge.s32.totalorder %s37, 1
      %s39 = scalar_select %p38, 0, %s37
      %s40 = sadd.s32 1, %s29
      %s41 = scalar_select %p38, %s40, %s29
      %p42 = scmp.ge.s32.totalorder %s41, 2
      %s43 = scalar_select %p42, 0, %s41
      %s44 = sadd.s32 1, %s28
      %s45 = scalar_select %p42, %s44, %s28
      %p46 = scmp.ge.s32.totalorder %s45, 1
      %s47 = scalar_select %p46, 0, %s45
      %s49 = sadd.s32 %s48, 1
      %p52 = scmp.eq.s32.totalorder %s21, 1
      %p53 = scmp.ne.s32.totalorder %s48, %s50
      %p54 = scmp.eq.s32.totalorder %s21, 0
      %p55 = por %p53, %p54
      %p56 = scmp.ne.s32.totalorder %s48, %s50
      %p57 = scmp.eq.s32.totalorder %s26, 1
      %p58 = por %p56, %p57
      %p59 = scmp.ne.s32.totalorder %s50, %s51
      %p60 = scmp.eq.s32.totalorder %s26, 0
      %p61 = por %p59, %p60
      %p62 = scmp.ne.s32.totalorder %s50, %s51
      %p63 = scmp.eq.s32.totalorder %s27, 1
      %p64 = por %p62, %p63
      %p66 = scmp.ne.s32.totalorder %s51, %s65
      %p67 = scmp.eq.s32.totalorder %s27, 0
      %p68 = por %p66, %p67
      %s70 = sadd.s32 %s69, 1
      %p73 = scmp.eq.s32.totalorder %s21, 1
      %p74 = scmp.ne.s32.totalorder %s69, %s71
      %p75 = scmp.eq.s32.totalorder %s21, 0
      %p76 = por %p74, %p75
      %p77 = scmp.ne.s32.totalorder %s69, %s71
      %p78 = scmp.eq.s32.totalorder %s26, 1
      %p79 = por %p77, %p78
      %p80 = scmp.ne.s32.totalorder %s71, %s72
      %p81 = scmp.eq.s32.totalorder %s26, 0
      %p82 = por %p80, %p81
      %p83 = scmp.ne.s32.totalorder %s71, %s72
      %p84 = scmp.eq.s32.totalorder %s27, 1
      %p85 = por %p83, %p84
      %p87 = scmp.ne.s32.totalorder %s72, %s86
      %p88 = scmp.eq.s32.totalorder %s27, 0
      %p89 = por %p87, %p88
      %s91 = sadd.s32 %s90, 1
      %p94 = scmp.eq.s32.totalorder %s21, 1
      %p95 = scmp.ne.s32.totalorder %s90, %s92
      %p96 = scmp.eq.s32.totalorder %s21, 0
      %p97 = por %p95, %p96
      %p98 = scmp.ne.s32.totalorder %s90, %s92
      %p99 = scmp.eq.s32.totalorder %s26, 1
      %p100 = por %p98, %p99
      %p101 = scmp.ne.s32.totalorder %s92, %s93
      %p102 = scmp.eq.s32.totalorder %s26, 0
      %p103 = por %p101, %p102
      %p104 = scmp.ne.s32.totalorder %s92, %s93
      %p105 = scmp.eq.s32.totalorder %s27, 1
      %p106 = por %p104, %p105
      %p108 = scmp.ne.s32.totalorder %s93, %s107
      %p109 = scmp.eq.s32.totalorder %s27, 0
      %p110 = por %p108, %p109
      %s111 = ssub.s32 %s30, %s39
      %p112 = scmp.eq.s32.totalorder %s111, 0
      %s114 = sadd.s32 %s113, 1
      %s115 = scalar_select %p112, %s113, %s114
      %p118 = pneg %p112
      %p119 = scmp.eq.s32.totalorder %s21, 1
      %p120 = por %p118, %p119
      %p121 = scmp.ne.s32.totalorder %s113, %s116
      %p122 = scmp.eq.s32.totalorder %s21, 0
      %p123 = por %p121, %p122
      %p124 = scmp.ne.s32.totalorder %s113, %s116
      %p125 = scmp.eq.s32.totalorder %s26, 1
      %p126 = por %p124, %p125
      %p127 = scmp.ne.s32.totalorder %s116, %s117
      %p128 = scmp.eq.s32.totalorder %s26, 0
      %p129 = por %p127, %p128
      %p130 = scmp.ne.s32.totalorder %s116, %s117
      %p131 = scmp.eq.s32.totalorder %s27, 1
      %p132 = por %p130, %p131
      %p134 = scmp.ne.s32.totalorder %s117, %s133
      %p135 = scmp.eq.s32.totalorder %s27, 0
      %p136 = por %p134, %p135
      %s137 = ssub.s32 %s30, %s39
      %p138 = scmp.eq.s32.totalorder %s137, 0
      %s140 = sadd.s32 %s139, 1
      %s141 = scalar_select %p138, %s139, %s140
      %p144 = pneg %p138
      %p145 = scmp.eq.s32.totalorder %s21, 1
      %p146 = por %p144, %p145
      %p147 = scmp.ne.s32.totalorder %s139, %s142
      %p148 = scmp.eq.s32.totalorder %s21, 0
      %p149 = por %p147, %p148
      %p150 = scmp.ne.s32.totalorder %s139, %s142
      %p151 = scmp.eq.s32.totalorder %s26, 1
      %p152 = por %p150, %p151
      %p153 = scmp.ne.s32.totalorder %s142, %s143
      %p154 = scmp.eq.s32.totalorder %s26, 0
      %p155 = por %p153, %p154
      %p156 = scmp.ne.s32.totalorder %s142, %s143
      %p157 = scmp.eq.s32.totalorder %s27, 1
      %p158 = por %p156, %p157
      %p160 = scmp.ne.s32.totalorder %s143, %s159
      %p161 = scmp.eq.s32.totalorder %s27, 0
      %p162 = por %p160, %p161
      %s163 = smul.u32 %s30, %s29
      %s164 = smul.u32 %s39, %s43
      %s165 = ssub.s32 %s28, %s47
      %s166 = ssub.s32 %s163, %s164
      %s167 = sor.u32 %s165, %s166
      %p168 = scmp.eq.s32.totalorder %s167, 0
      %s170 = sadd.s32 %s169, 1
      %s171 = scalar_select %p168, %s169, %s170
      %p174 = pneg %p168
      %p175 = scmp.eq.s32.totalorder %s21, 1
      %p176 = por %p174, %p175
      %p177 = scmp.ne.s32.totalorder %s169, %s172
      %p178 = scmp.eq.s32.totalorder %s21, 0
      %p179 = por %p177, %p178
      %p180 = scmp.ne.s32.totalorder %s169, %s172
      %p181 = scmp.eq.s32.totalorder %s26, 1
      %p182 = por %p180, %p181
      %p183 = scmp.ne.s32.totalorder %s172, %s173
      %p184 = scmp.eq.s32.totalorder %s26, 0
      %p185 = por %p183, %p184
      %p186 = scmp.ne.s32.totalorder %s172, %s173
      %p187 = scmp.eq.s32.totalorder %s27, 1
      %p188 = por %p186, %p187
      %p190 = scmp.ne.s32.totalorder %s173, %s189
      %p191 = scmp.eq.s32.totalorder %s27, 0
      %p192 = por %p190, %p191
      %p193 = scmp.le.s32.totalorder 1, %s21
      %p194 = scmp.lt.s32.totalorder %s21, 3
      %p195 = pnand %p193, %p194
      %p196 = pneg %p195
      // Predicated region
      $region9: #{tpu_custom_call.1} parent=5 // pred_check
        _
      $region10: #{tpu_custom_call.1} parent=5 // pred_check_branch
        %198 = sbr.rel (%p195) target = $region12
      $region11: #{tpu_custom_call.1} parent=5 // pred_region
        %s199 = ssub.s32 %s21, 1
        // Predicated region
        $region13: #{tpu_custom_call.1} parent=11 // pred_check
          %p200 = pneg %p61
        $region14: #{tpu_custom_call.1} parent=11 // pred_check_branch
          %202 = sbr.rel (%p200) target = $region16
        $region15: #{tpu_custom_call.1} parent=11 // pred_region
          %s204 = ssub.s32 2048, 2048
          %205 = vsyncadd [#allocation9], %s204
          %s206 = sshll.u32 [#allocation8], 4
          %s207 = int_to_ptr.vmem [resolvable:$true] %s206
          %212 = dma.hbm_to_vmem [thread:$0]  %s1, 2048, %s207, [#allocation9], 128, 128, 8
        $region16: #{tpu_custom_call.1} parent=11 // pred_fallthru
          _
        // Predicated region
        $region17: #{tpu_custom_call.1} parent=11 // pred_check
          %p213 = pneg %p82
        $region18: #{tpu_custom_call.1} parent=11 // pred_check_branch
          %215 = sbr.rel (%p213) target = $region20
        $region19: #{tpu_custom_call.1} parent=11 // pred_region
          %s217 = ssub.s32 1024, 1024
          %218 = vsyncadd [#allocation12], %s217
          %s219 = sshll.u32 [#allocation11], 4
          %s220 = int_to_ptr.vmem [resolvable:$true] %s219
          %225 = dma.hbm_to_vmem [thread:$0]  %s2, 1024, %s220, [#allocation12], 64, 64, 4
        $region20: #{tpu_custom_call.1} parent=11 // pred_fallthru
          _
        // Predicated region
        $region21: #{tpu_custom_call.1} parent=11 // pred_check
          %p226 = pneg %p103
        $region22: #{tpu_custom_call.1} parent=11 // pred_check_branch
          %228 = sbr.rel (%p226) target = $region24
        $region23: #{tpu_custom_call.1} parent=11 // pred_region
          _
        $region24: #{tpu_custom_call.1} parent=11 // pred_fallthru
          _
        // Predicated region
        $region25: #{tpu_custom_call.1} parent=11 // pred_check
          %p229 = pneg %p129
        $region26: #{tpu_custom_call.1} parent=11 // pred_check_branch
          %231 = sbr.rel (%p229) target = $region28
        $region27: #{tpu_custom_call.1} parent=11 // pred_region
          %s233 = ssub.s32 1024, 1024
          %234 = vsyncadd [#allocation12], %s233
          %s235 = smul.addr %s33, 64
          %s236 = scalar_lea.hbm %s4, %s235
          %s237 = sshll.u32 [#allocation13], 4
          %s238 = int_to_ptr.vmem [resolvable:$true] %s237
          %243 = dma.hbm_to_vmem [thread:$0]  %s236, 1024, %s238, [#allocation12], 64, 64, 4
        $region28: #{tpu_custom_call.1} parent=11 // pred_fallthru
          _
        // Predicated region
        $region29: #{tpu_custom_call.1} parent=11 // pred_check
          %p244 = pneg %p155
        $region30: #{tpu_custom_call.1} parent=11 // pred_check_branch
          %246 = sbr.rel (%p244) target = $region32
        $region31: #{tpu_custom_call.1} parent=11 // pred_region
          %p247 = scmp.lt.s32.totalorder %s33, 0
          %s248 = scalar_select %p247, %s33, 0
          %s249 = scalar_lea.vmem %s5, %s248
        $region32: #{tpu_custom_call.1} parent=11 // pred_fallthru
          _
      $region12: #{tpu_custom_call.1} parent=5 // pred_fallthru
        _
      %p250 = scmp.lt.s32.totalorder %s21, 2
      // Predicated region
      $region33: #{tpu_custom_call.1} parent=5 // pred_check
        %p251 = pneg %p250
      $region34: #{tpu_custom_call.1} parent=5 // pred_check_branch
        %253 = sbr.rel (%p251) target = $region36
      $region35: #{tpu_custom_call.1} parent=5 // pred_region
        _
      $region36: #{tpu_custom_call.1} parent=5 // pred_fallthru
        _
      %p254 = scmp.le.s32.totalorder 1, %s21
      %p255 = scmp.lt.s32.totalorder %s21, 3
      %p256 = pnand %p254, %p255
      %p257 = pneg %p256
      // Predicated region
      $region37: #{tpu_custom_call.1} parent=5 // pred_check
        _
      $region38: #{tpu_custom_call.1} parent=5 // pred_check_branch
        %259 = sbr.rel (%p256) target = $region40
      $region39: #{tpu_custom_call.1} parent=5 // pred_region
        %s260 = ssub.s32 %s21, 1
        // Predicated region
        $region41: #{tpu_custom_call.1} parent=39 // pred_check
          %p261 = pneg %p61
        $region42: #{tpu_custom_call.1} parent=39 // pred_check_branch
          %263 = sbr.rel (%p261) target = $region44
        $region43: #{tpu_custom_call.1} parent=39 // pred_region
          %264 = dma.done [#allocation9], 2048
        $region44: #{tpu_custom_call.1} parent=39 // pred_fallthru
          _
        // Predicated region
        $region45: #{tpu_custom_call.1} parent=39 // pred_check
          %p265 = pneg %p82
        $region46: #{tpu_custom_call.1} parent=39 // pred_check_branch
          %267 = sbr.rel (%p265) target = $region48
        $region47: #{tpu_custom_call.1} parent=39 // pred_region
          %268 = dma.done [#allocation12], 1024
        $region48: #{tpu_custom_call.1} parent=39 // pred_fallthru
          _
        // Predicated region
        $region49: #{tpu_custom_call.1} parent=39 // pred_check
          %p269 = pneg %p129
        $region50: #{tpu_custom_call.1} parent=39 // pred_check_branch
          %271 = sbr.rel (%p269) target = $region52
        $region51: #{tpu_custom_call.1} parent=39 // pred_region
          %272 = dma.done [#allocation12], 1024
        $region52: #{tpu_custom_call.1} parent=39 // pred_fallthru
          _
        %p273 = pneg %p61
        %p274 = pneg %p58
        %p275 = pneg %p82
        %p276 = pneg %p79
        %p277 = pneg %p103
        %p278 = pneg %p100
        %p279 = pneg %p129
        %p280 = pneg %p126
        %p281 = scmp.lt.s32.totalorder %s33, 0
        %s282 = scalar_select %p281, %s33, 0
        %s283 = scalar_lea.vmem %s5, %s282
        %p284 = pneg %p155
        %p285 = pneg %p152
        %p286 = pneg %p185
        %p287 = pneg %p182
        %s288 = sand.u32 %s172, 1
        %s289 = scalar_lea.sflag [#allocation10], %s288
        %s290 = sand.u32 %s172, 1
        %s291 = smul.addr %s290, 8
        %s292 = scalar_lea.vmem [#allocation14], %s291
        %p293 = scmp.lt.s32.totalorder %s33, 0
        %s294 = scalar_select %p293, %s33, 0
        %s295 = scalar_lea.vmem %s5, %s294
        %s296 = smul.u32 %s33, %s32
        %p298 = scmp.eq.s32.totalorder %s32, 0
        %p299 = scmp.eq.s32.totalorder %s33, 0
        %p300 = pnand %p298, %p299
        %p301 = pneg %p300
        // Predicated region
        $region53: #{tpu_custom_call.1} parent=39 // pred_check
          _
        $region54: #{tpu_custom_call.1} parent=39 // pred_check_branch
          %303 = sbr.rel (%p300) target = $region56
        $region55: #{tpu_custom_call.1} parent=39 // pred_region
          loop: start=0, step=1, limit=8
          $region57: #{tpu_custom_call.1} parent=55 // loop_pre_header
            _
          $region58: #{tpu_custom_call.1} parent=55 // loop_header
            %s305 = sphi 0, %s309
            %p306 = scmp.ge.s32.totalorder %s305, 8
          $region59: #{tpu_custom_call.1} parent=55 // loop_header_branch
            %308 = sbr.rel (%p306) target = $region63
          $region60: #{tpu_custom_call.1} parent=55 // loop_body
            %s310 = smul.u32 %s31, 8
            %s311 = sadd.s32 %s310, %s305
            %s312 = smul.u32 %s311, 8
            %s313 = sld [smem:[#allocation7 + %s312]]
            %s314 = scalar_lea.vmem [#allocation8], %s313
            %v315 = vld [vmem:[%s314] sm:$0x1]
            %v316 = vadd.f32 %v315, 0.0
            %s317 = sadd.s32 %s312, 1
            %s318 = sld [smem:[#allocation7 + %s317]]
            %s319 = scalar_lea.vmem [#allocation8], %s318
            %v320 = vld [vmem:[%s319] sm:$0x1]
            %v321 = vadd.f32 %v316, %v320
            %s322 = sadd.s32 %s312, 2
            %s323 = sld [smem:[#allocation7 + %s322]]
            %s324 = scalar_lea.vmem [#allocation8], %s323
            %v325 = vld [vmem:[%s324] sm:$0x1]
            %v326 = vadd.f32 %v321, %v325
            %s327 = sadd.s32 %s312, 3
            %s328 = sld [smem:[#allocation7 + %s327]]
            %s329 = scalar_lea.vmem [#allocation8], %s328
            %v330 = vld [vmem:[%s329] sm:$0x1]
            %v331 = vadd.f32 %v326, %v330
            %s332 = sadd.s32 %s312, 4
            %s333 = sld [smem:[#allocation7 + %s332]]
            %s334 = scalar_lea.vmem [#allocation8], %s333
            %v335 = vld [vmem:[%s334] sm:$0x1]
            %v336 = vadd.f32 %v331, %v335
            %s337 = sadd.s32 %s312, 5
            %s338 = sld [smem:[#allocation7 + %s337]]
            %s339 = scalar_lea.vmem [#allocation8], %s338
            %v340 = vld [vmem:[%s339] sm:$0x1]
            %v341 = vadd.f32 %v336, %v340
            %s342 = sadd.s32 %s312, 6
            %s343 = sld [smem:[#allocation7 + %s342]]
            %s344 = scalar_lea.vmem [#allocation8], %s343
            %v345 = vld [vmem:[%s344] sm:$0x1]
            %v346 = vadd.f32 %v341, %v345
            %s347 = sadd.s32 %s312, 7
            %s348 = sld [smem:[#allocation7 + %s347]]
            %s349 = scalar_lea.vmem [#allocation8], %s348
            %v350 = vld [vmem:[%s349] sm:$0x1]
            %v351 = vadd.f32 %v346, %v350
            %s352 = scalar_lea.vmem [#allocation2], %s305
            %353 = vst [vmem:[%s352] sm:$0x1] %v351
          $region61: #{tpu_custom_call.1} parent=55 // loop_footer
            %s309 = sadd.s32 1, %s305
          $region62: #{tpu_custom_call.1} parent=55 // loop_footer_branch
            %304 = sbr.rel target = $region58
          $region63: #{tpu_custom_call.1} parent=55 // loop_exit
            _
          %v354 = vld [vmem:[#allocation2] sm:$0xff]
          %v355 = vpack.c.bf16 %v354, %v354
          %v356 = vld [vmem:[#allocation11] sm:$0xf]
          %v357 = vld [vmem:[#allocation11 + $0x4] sm:$0xf]
          %v358 = vld [vmem:[#allocation11 + $0x8] sm:$0xf]
          %v359 = vld [vmem:[#allocation11 + $0xc] sm:$0xf]
          %v360 = vld [vmem:[#allocation11 + $0x10] sm:$0xf]
          %v361 = vld [vmem:[#allocation11 + $0x14] sm:$0xf]
          %v362 = vld [vmem:[#allocation11 + $0x18] sm:$0xf]
          %v363 = vld [vmem:[#allocation11 + $0x1c] sm:$0xf]
          %v364 = vld [vmem:[#allocation11 + $0x20] sm:$0xf]
          %v365 = vld [vmem:[#allocation11 + $0x24] sm:$0xf]
          %v366 = vld [vmem:[#allocation11 + $0x28] sm:$0xf]
          %v367 = vld [vmem:[#allocation11 + $0x2c] sm:$0xf]
          %v368 = vld [vmem:[#allocation11 + $0x30] sm:$0xf]
          %v369 = vld [vmem:[#allocation11 + $0x34] sm:$0xf]
          %v370 = vld [vmem:[#allocation11 + $0x38] sm:$0xf]
          %v371 = vld [vmem:[#allocation11 + $0x3c] sm:$0xf]
          %v372 = vld [vmem:[%s3] sm:$0x1]
          %v374 = vlaneseq
          %v375 = vshrl.u32 %v374, 7
          %v376 = vsub.s32 0, %v375
          %v377 = vrot.slane %v372, %v376
          %v395 = vunpack.c.l.b16 %v356
          %v396 = vunpack.c.l.b16 %v357
          %v397 = vunpack.c.l.b16 %v358
          %v398 = vunpack.c.l.b16 %v359
          %v399 = vunpack.c.l.b16 %v360
          %v400 = vunpack.c.l.b16 %v361
          %v401 = vunpack.c.l.b16 %v362
          %v402 = vunpack.c.l.b16 %v363
          %v403 = vunpack.c.l.b16 %v364
          %v404 = vunpack.c.l.b16 %v365
          %v405 = vunpack.c.l.b16 %v366
          %v406 = vunpack.c.l.b16 %v367
          %v407 = vunpack.c.l.b16 %v368
          %v408 = vunpack.c.l.b16 %v369
          %v409 = vunpack.c.l.b16 %v370
          %v410 = vunpack.c.l.b16 %v371
          %v411 = vpack.c.b16 %v396, %v395
          %v412 = vpack.c.b16 %v398, %v397
          %v413 = vpack.c.b16 %v400, %v399
          %v414 = vpack.c.b16 %v402, %v401
          %v415 = vpack.c.b16 %v404, %v403
          %v416 = vpack.c.b16 %v406, %v405
          %v417 = vpack.c.b16 %v408, %v407
          %v418 = vpack.c.b16 %v410, %v409
          %427 = vmatprep.subr.bf16.mxu0 0
          %428 = vmatpush1.bf16.msra.mxu0 %v418
          %429 = vmatprep.subr.bf16.mxu0 0
          %430 = vmatpush1.bf16.msra.mxu0 %v417
          %431 = vmatprep.subr.bf16.mxu0 0
          %432 = vmatpush1.bf16.msra.mxu0 %v416
          %433 = vmatprep.subr.bf16.mxu0 0
          %434 = vmatpush1.bf16.msra.mxu0 %v415
          %435 = vmatprep.subr.bf16.mxu0 0
          %436 = vmatpush1.bf16.msra.mxu0 %v414
          %437 = vmatprep.subr.bf16.mxu0 0
          %438 = vmatpush1.bf16.msra.mxu0 %v413
          %439 = vmatprep.subr.bf16.mxu0 0
          %440 = vmatpush1.bf16.msra.mxu0 %v412
          %441 = vmatprep.subr.bf16.mxu0 0
          %442 = vmatpush1.bf16.msra.mxu0 %v411
          %443 = vmatprep.subr.bf16.mxu0 0
          %444 = vmatpush2.bf16.msra.mxu0 0
          %445 = vmatprep.subr.bf16.mxu0 0
          %446 = vmatpush2.bf16.msra.mxu0 0
          %447 = vmatprep.subr.bf16.mxu0 0
          %448 = vmatpush2.bf16.msra.mxu0 0
          %449 = vmatprep.subr.bf16.mxu0 0
          %450 = vmatpush2.bf16.msra.mxu0 0
          %451 = vmatprep.subr.bf16.mxu0 0
          %452 = vmatpush2.bf16.msra.mxu0 0
          %453 = vmatprep.subr.bf16.mxu0 0
          %454 = vmatpush2.bf16.msra.mxu0 0
          %455 = vmatprep.subr.bf16.mxu0 0
          %456 = vmatpush2.bf16.msra.mxu0 0
          %457 = vmatprep.subr.bf16.mxu0 0
          %458 = vmatpush2.bf16.msra.mxu0 0
          %459 = vmatprep.mubr.bf16.mxu0 0
          %460 = vmatmul.mubr.bf16.gmra.mxu0 %v355
          %v461 = vpop.f32.mrf.mxu0
          %v462 = vadd.f32 %v377, %v461
          %v463 = vpop.f32.mrf.mxu0
          %v464 = vpop.f32.mrf.mxu0
          %v465 = vpop.f32.mrf.mxu0
          %466 = vdwg.mxu0
          %v467 = vmax.f32 %v462, 0.0
          %468 = vst [vmem:[#allocation3] sm:$0xff] %v467
          %vm469 = vcmask 7168
          %470 = vst.msk [vmem:[#allocation4] sm:$0xff] %vm469, -inf
          %471 = vst.msk [vmem:[#allocation5] sm:$0xff] %vm469, 0.0
        $region56: #{tpu_custom_call.1} parent=39 // pred_fallthru
          _
        // Predicated region
        $region64: #{tpu_custom_call.1} parent=39 // pred_check
          %p472 = pneg %p298
        $region65: #{tpu_custom_call.1} parent=39 // pred_check_branch
          %474 = sbr.rel (%p472) target = $region67
        $region66: #{tpu_custom_call.1} parent=39 // pred_region
          %v475 = vld [vmem:[#allocation3] sm:$0xff]
          %v476 = vpack.c.bf16 %v475, %v475
          %v477 = vld [vmem:[#allocation13] sm:$0xf]
          %v478 = vld [vmem:[#allocation13 + $0x4] sm:$0xf]
          %v479 = vld [vmem:[#allocation13 + $0x8] sm:$0xf]
          %v480 = vld [vmem:[#allocation13 + $0xc] sm:$0xf]
          %v481 = vld [vmem:[#allocation13 + $0x10] sm:$0xf]
          %v482 = vld [vmem:[#allocation13 + $0x14] sm:$0xf]
          %v483 = vld [vmem:[#allocation13 + $0x18] sm:$0xf]
          %v484 = vld [vmem:[#allocation13 + $0x1c] sm:$0xf]
          %v485 = vld [vmem:[#allocation13 + $0x20] sm:$0xf]
          %v486 = vld [vmem:[#allocation13 + $0x24] sm:$0xf]
          %v487 = vld [vmem:[#allocation13 + $0x28] sm:$0xf]
          %v488 = vld [vmem:[#allocation13 + $0x2c] sm:$0xf]
          %v489 = vld [vmem:[#allocation13 + $0x30] sm:$0xf]
          %v490 = vld [vmem:[#allocation13 + $0x34] sm:$0xf]
          %v491 = vld [vmem:[#allocation13 + $0x38] sm:$0xf]
          %v492 = vld [vmem:[#allocation13 + $0x3c] sm:$0xf]
          %v493 = vld [vmem:[%s295] sm:$0x1]
          %v495 = vlaneseq
          %v496 = vshrl.u32 %v495, 7
          %v497 = vsub.s32 0, %v496
          %v498 = vrot.slane %v493, %v497
          %v516 = vunpack.c.l.b16 %v477
          %v517 = vunpack.c.l.b16 %v478
          %v518 = vunpack.c.l.b16 %v479
          %v519 = vunpack.c.l.b16 %v480
          %v520 = vunpack.c.l.b16 %v481
          %v521 = vunpack.c.l.b16 %v482
          %v522 = vunpack.c.l.b16 %v483
          %v523 = vunpack.c.l.b16 %v484
          %v524 = vunpack.c.l.b16 %v485
          %v525 = vunpack.c.l.b16 %v486
          %v526 = vunpack.c.l.b16 %v487
          %v527 = vunpack.c.l.b16 %v488
          %v528 = vunpack.c.l.b16 %v489
          %v529 = vunpack.c.l.b16 %v490
          %v530 = vunpack.c.l.b16 %v491
          %v531 = vunpack.c.l.b16 %v492
          %v532 = vpack.c.b16 %v517, %v516
          %v533 = vpack.c.b16 %v519, %v518
          %v534 = vpack.c.b16 %v521, %v520
          %v535 = vpack.c.b16 %v523, %v522
          %v536 = vpack.c.b16 %v525, %v524
          %v537 = vpack.c.b16 %v527, %v526
          %v538 = vpack.c.b16 %v529, %v528
          %v539 = vpack.c.b16 %v531, %v530
          %548 = vmatprep.subr.bf16.mxu0 0
          %549 = vmatpush1.bf16.msra.mxu0 %v539
          %550 = vmatprep.subr.bf16.mxu0 0
          %551 = vmatpush1.bf16.msra.mxu0 %v538
          %552 = vmatprep.subr.bf16.mxu0 0
          %553 = vmatpush1.bf16.msra.mxu0 %v537
          %554 = vmatprep.subr.bf16.mxu0 0
          %555 = vmatpush1.bf16.msra.mxu0 %v536
          %556 = vmatprep.subr.bf16.mxu0 0
          %557 = vmatpush1.bf16.msra.mxu0 %v535
          %558 = vmatprep.subr.bf16.mxu0 0
          %559 = vmatpush1.bf16.msra.mxu0 %v534
          %560 = vmatprep.subr.bf16.mxu0 0
          %561 = vmatpush1.bf16.msra.mxu0 %v533
          %562 = vmatprep.subr.bf16.mxu0 0
          %563 = vmatpush1.bf16.msra.mxu0 %v532
          %564 = vmatprep.subr.bf16.mxu0 0
          %565 = vmatpush2.bf16.msra.mxu0 0
          %566 = vmatprep.subr.bf16.mxu0 0
          %567 = vmatpush2.bf16.msra.mxu0 0
          %568 = vmatprep.subr.bf16.mxu0 0
          %569 = vmatpush2.bf16.msra.mxu0 0
          %570 = vmatprep.subr.bf16.mxu0 0
          %571 = vmatpush2.bf16.msra.mxu0 0
          %572 = vmatprep.subr.bf16.mxu0 0
          %573 = vmatpush2.bf16.msra.mxu0 0
          %574 = vmatprep.subr.bf16.mxu0 0
          %575 = vmatpush2.bf16.msra.mxu0 0
          %576 = vmatprep.subr.bf16.mxu0 0
          %577 = vmatpush2.bf16.msra.mxu0 0
          %578 = vmatprep.subr.bf16.mxu0 0
          %579 = vmatpush2.bf16.msra.mxu0 0
          %580 = vmatprep.mubr.bf16.mxu0 0
          %581 = vmatmul.mubr.bf16.gmra.mxu0 %v476
          %v582 = vpop.f32.mrf.mxu0
          %v583 = vadd.f32 %v498, %v582
          %v584 = vpop.f32.mrf.mxu0
          %v585 = vpop.f32.mrf.mxu0
          %v586 = vpop.f32.mrf.mxu0
          %587 = vdwg.mxu0
          %v588 = vld [vmem:[#allocation4] sm:$0xff]
          %589 = vmax.xlane.f32.xlu0 %v583
          %v590 = vpop.xlane.xlu0 %589
          %v591 = vmax.f32 %v588, %v590
          %v592 = vld [vmem:[#allocation5] sm:$0xff]
          %v593 = vsub.f32 %v588, %v591
          %v594 = vmul.f32 %v593, 1.442695
          %v595 = vpow.pop %v594
          %v596 = vmul.f32 %v592, %v595
          %598 = vset.pattern.permute.xlu0 0
          %599 = vperm.xlu0 %598, %v591
          %v600 = vpop.permute.xlu0 %599
          %v602 = vsub.f32 %v583, %v600
          %v603 = vmul.f32 %v602, 1.442695
          %v604 = vpow.pop %v603
          %605 = vadd.xlane.f32.xlu0 %v604
          %v606 = vpop.xlane.xlu0 %605
          %v607 = vadd.f32 %v596, %v606
          %vm608 = vcmask 7168
          %609 = vst.msk [vmem:[#allocation5] sm:$0xff] %vm608, %v607
          %610 = vst.msk [vmem:[#allocation4] sm:$0xff] %vm608, %v591
        $region67: #{tpu_custom_call.1} parent=39 // pred_fallthru
          _
        %p611 = scmp.eq.s32.totalorder %s32, 1
        // Predicated region
        $region68: #{tpu_custom_call.1} parent=39 // pred_check
          %p612 = pneg %p611
        $region69: #{tpu_custom_call.1} parent=39 // pred_check_branch
          %614 = sbr.rel (%p612) target = $region71
        $region70: #{tpu_custom_call.1} parent=39 // pred_region
          %v615 = vld [vmem:[#allocation3] sm:$0xff]
          %v616 = vpack.c.bf16 %v615, %v615
          %v617 = vld [vmem:[#allocation13] sm:$0xf]
          %v618 = vld [vmem:[#allocation13 + $0x4] sm:$0xf]
          %v619 = vld [vmem:[#allocation13 + $0x8] sm:$0xf]
          %v620 = vld [vmem:[#allocation13 + $0xc] sm:$0xf]
          %v621 = vld [vmem:[#allocation13 + $0x10] sm:$0xf]
          %v622 = vld [vmem:[#allocation13 + $0x14] sm:$0xf]
          %v623 = vld [vmem:[#allocation13 + $0x18] sm:$0xf]
          %v624 = vld [vmem:[#allocation13 + $0x1c] sm:$0xf]
          %v625 = vld [vmem:[#allocation13 + $0x20] sm:$0xf]
          %v626 = vld [vmem:[#allocation13 + $0x24] sm:$0xf]
          %v627 = vld [vmem:[#allocation13 + $0x28] sm:$0xf]
          %v628 = vld [vmem:[#allocation13 + $0x2c] sm:$0xf]
          %v629 = vld [vmem:[#allocation13 + $0x30] sm:$0xf]
          %v630 = vld [vmem:[#allocation13 + $0x34] sm:$0xf]
          %v631 = vld [vmem:[#allocation13 + $0x38] sm:$0xf]
          %v632 = vld [vmem:[#allocation13 + $0x3c] sm:$0xf]
          %v633 = vld [vmem:[%s295] sm:$0x1]
          %v635 = vlaneseq
          %v636 = vshrl.u32 %v635, 7
          %v637 = vsub.s32 0, %v636
          %v638 = vrot.slane %v633, %v637
          %v656 = vunpack.c.l.b16 %v617
          %v657 = vunpack.c.l.b16 %v618
          %v658 = vunpack.c.l.b16 %v619
          %v659 = vunpack.c.l.b16 %v620
          %v660 = vunpack.c.l.b16 %v621
          %v661 = vunpack.c.l.b16 %v622
          %v662 = vunpack.c.l.b16 %v623
          %v663 = vunpack.c.l.b16 %v624
          %v664 = vunpack.c.l.b16 %v625
          %v665 = vunpack.c.l.b16 %v626
          %v666 = vunpack.c.l.b16 %v627
          %v667 = vunpack.c.l.b16 %v628
          %v668 = vunpack.c.l.b16 %v629
          %v669 = vunpack.c.l.b16 %v630
          %v670 = vunpack.c.l.b16 %v631
          %v671 = vunpack.c.l.b16 %v632
          %v672 = vpack.c.b16 %v657, %v656
          %v673 = vpack.c.b16 %v659, %v658
          %v674 = vpack.c.b16 %v661, %v660
          %v675 = vpack.c.b16 %v663, %v662
          %v676 = vpack.c.b16 %v665, %v664
          %v677 = vpack.c.b16 %v667, %v666
          %v678 = vpack.c.b16 %v669, %v668
          %v679 = vpack.c.b16 %v671, %v670
          %688 = vmatprep.subr.bf16.mxu0 0
          %689 = vmatpush1.bf16.msra.mxu0 %v679
          %690 = vmatprep.subr.bf16.mxu0 0
          %691 = vmatpush1.bf16.msra.mxu0 %v678
          %692 = vmatprep.subr.bf16.mxu0 0
          %693 = vmatpush1.bf16.msra.mxu0 %v677
          %694 = vmatprep.subr.bf16.mxu0 0
          %695 = vmatpush1.bf16.msra.mxu0 %v676
          %696 = vmatprep.subr.bf16.mxu0 0
          %697 = vmatpush1.bf16.msra.mxu0 %v675
          %698 = vmatprep.subr.bf16.mxu0 0
          %699 = vmatpush1.bf16.msra.mxu0 %v674
          %700 = vmatprep.subr.bf16.mxu0 0
          %701 = vmatpush1.bf16.msra.mxu0 %v673
          %702 = vmatprep.subr.bf16.mxu0 0
          %703 = vmatpush1.bf16.msra.mxu0 %v672
          %704 = vmatprep.subr.bf16.mxu0 0
          %705 = vmatpush2.bf16.msra.mxu0 0
          %706 = vmatprep.subr.bf16.mxu0 0
          %707 = vmatpush2.bf16.msra.mxu0 0
          %708 = vmatprep.subr.bf16.mxu0 0
          %709 = vmatpush2.bf16.msra.mxu0 0
          %710 = vmatprep.subr.bf16.mxu0 0
          %711 = vmatpush2.bf16.msra.mxu0 0
          %712 = vmatprep.subr.bf16.mxu0 0
          %713 = vmatpush2.bf16.msra.mxu0 0
          %714 = vmatprep.subr.bf16.mxu0 0
          %715 = vmatpush2.bf16.msra.mxu0 0
          %716 = vmatprep.subr.bf16.mxu0 0
          %717 = vmatpush2.bf16.msra.mxu0 0
          %718 = vmatprep.subr.bf16.mxu0 0
          %719 = vmatpush2.bf16.msra.mxu0 0
          %720 = vmatprep.mubr.bf16.mxu0 0
          %721 = vmatmul.mubr.bf16.gmra.mxu0 %v616
          %v722 = vpop.f32.mrf.mxu0
          %v723 = vadd.f32 %v638, %v722
          %v724 = vpop.f32.mrf.mxu0
          %v725 = vpop.f32.mrf.mxu0
          %v726 = vpop.f32.mrf.mxu0
          %727 = vdwg.mxu0
          %v728 = vld [vmem:[#allocation4] sm:$0xff]
          %v729 = vld [vmem:[#allocation5] sm:$0xff]
          %v730 = vlog2.pop %v729
          %v731 = vmul.f32 %v730, 0.6931472
          %v732 = vadd.f32 %v728, %v731
          %734 = vset.pattern.permute.xlu0 0
          %735 = vperm.xlu0 %734, %v732
          %v736 = vpop.permute.xlu0 %735
          %v738 = vsub.f32 %v723, %v736
          %739 = vst [vmem:[%s292] sm:$0xff] %v738
        $region71: #{tpu_custom_call.1} parent=39 // pred_fallthru
          _
        %s740 = sand.u32 %s172, 1
        %s741 = scalar_lea.sflag [#allocation10], %s740
        %s742 = sand.u32 %s172, 1
        %s743 = smul.addr %s742, 8
        %s744 = scalar_lea.vmem [#allocation14], %s743
        // Predicated region
        $region72: #{tpu_custom_call.1} parent=39 // pred_check
          %p745 = pneg %p182
        $region73: #{tpu_custom_call.1} parent=39 // pred_check_branch
          %747 = sbr.rel (%p745) target = $region75
        $region74: #{tpu_custom_call.1} parent=39 // pred_region
          %s748 = smul.u32 %s33, %s32
          %s750 = ssub.s32 128, 128
          %751 = vsyncadd %s741, %s750
          %s752 = sadd.s32 %s748, %s31
          %s753 = smul.addr %s752, 128
          %s754 = scalar_lea.hbm %s6, %s753
          %s756 = sshll.u32 %s744, 4
          %s757 = int_to_ptr.vmem [resolvable:$true] %s756
          %759 = dma.vmem_to_hbm [thread:$0]  %s757, 128, %s754, %s741
        $region75: #{tpu_custom_call.1} parent=39 // pred_fallthru
          _
      $region40: #{tpu_custom_call.1} parent=5 // pred_fallthru
        _
      %p760 = scmp.le.s32.totalorder 2, %s21
      // Predicated region
      $region76: #{tpu_custom_call.1} parent=5 // pred_check
        %p761 = pneg %p760
      $region77: #{tpu_custom_call.1} parent=5 // pred_check_branch
        %763 = sbr.rel (%p761) target = $region79
      $region78: #{tpu_custom_call.1} parent=5 // pred_region
        %s764 = ssub.s32 %s21, 2
        // Predicated region
        $region80: #{tpu_custom_call.1} parent=78 // pred_check
          %p765 = pneg %p188
        $region81: #{tpu_custom_call.1} parent=78 // pred_check_branch
          %767 = sbr.rel (%p765) target = $region83
        $region82: #{tpu_custom_call.1} parent=78 // pred_region
          %s768 = sand.u32 %s173, 1
          %s769 = scalar_lea.sflag [#allocation10], %s768
          %s770 = sand.u32 %s173, 1
          %s771 = smul.addr %s770, 8
          %s772 = scalar_lea.vmem [#allocation14], %s771
          %773 = dma.done %s769, 128
        $region83: #{tpu_custom_call.1} parent=78 // pred_fallthru
          _
      $region79: #{tpu_custom_call.1} parent=5 // pred_fallthru
        _
    $region6: #{tpu_custom_call.1} parent=1 // loop_footer
      %s25 = sadd.s32 1, %s21
    $region7: #{tpu_custom_call.1} parent=1 // loop_footer_branch
      %20 = sbr.rel target = $region3
    $region8: #{tpu_custom_call.1} parent=1 // loop_exit
      _
    %774 = vsyncpa [#allocation9], 1
    %s775 = scalar_lea.sflag [#allocation9], 1
    %776 = vsyncpa %s775, 1
    %777 = vsyncpa [#allocation12], 1
    %778 = vsyncpa [#allocation10], 1
    %s779 = scalar_lea.sflag [#allocation10], 1
    %780 = vsyncpa %s779, 1

</llo_original>
